<compile_context>
chip_gen: v6e
topology: v6e:2x2x1
jax: 0.10.0
libtpu: 0.0.40
codegen_flags: <defaults>
</compile_context>

<pallas_src>
import functools
import math

import jax
import jax.numpy as jnp
from jax import lax
from jax.experimental import pallas as pl
from jax.experimental.pallas import tpu as pltpu


_VMEM_LIMIT = 32 * 1024 * 1024  # sized for v7x's smaller VMEM; safe on v5e/v6e too


# ----------------------------------------------------------------------------- kernels

def _conv1x1_pre_post_kernel(x_ref, s_pre_ref, t_pre_ref, w_ref, b_ref,
                             s_post_ref, t_post_ref, o_ref):
    # relu(x*scale_pre + shift_pre) @ W + b, then relu(y*scale_post + shift_post).
    # x_ref: (1, TM, Cin); s/t_pre: (1, 1, Cin); w: (Cin, Cout); b: (1, Cout)
    a = jnp.maximum(x_ref[0] * s_pre_ref[0] + t_pre_ref[0], 0.0)          # (TM, Cin)
    y = jnp.dot(a, w_ref[...], preferred_element_type=jnp.float32) + b_ref[...]
    o_ref[0] = jnp.maximum(y * s_post_ref[0] + t_post_ref[0], 0.0)


def _conv3x3_post_kernel(a_ref, w_ref, b_ref, s_post_ref, t_post_ref,
                         mask_l_ref, mask_r_ref, o_ref, ap_ref, lhs_ref,
                         *, w_pix, pad):
    # 3x3 same-padding conv on an already-activated, row-flattened sample:
    # the 9 taps are built in VMEM as shifted views of a zero-padded copy and
    # packed into one (M, 9*Cin) operand -> a single K=9*Cin MXU matmul.
    # Epilogue: relu(y*scale_post + shift_post)  (the next layer's cond-BN + ReLU).
    M = a_ref.shape[1]
    cin = a_ref.shape[2]
    a = a_ref[0]                                                          # (M, Cin)

    # zero-padded flat activation: ap[p] = a[p - pad] inside, 0 in the borders
    zeros_pad = jnp.zeros((pad, cin), jnp.float32)
    ap_ref[0:pad, :] = zeros_pad
    ap_ref[pad + M:pad + M + pad, :] = zeros_pad
    ap_ref[pad:pad + M, :] = a

    mask_l = mask_l_ref[...]                                              # (M, 1)
    mask_r = mask_r_ref[...]                                              # (M, 1)

    for dy in range(3):
        for dx in range(3):
            k = dy * 3 + dx
            start = pad + (dy - 1) * w_pix + (dx - 1)
            t = ap_ref[start:start + M, :]                                # (M, Cin)
            if dx == 0:
                t = t * mask_l      # zero out taps that wrapped across the left edge
            elif dx == 2:
                t = t * mask_r      # zero out taps that wrapped across the right edge
            lhs_ref[:, k * cin:(k + 1) * cin] = t

    y = jnp.dot(lhs_ref[...], w_ref[...], preferred_element_type=jnp.float32)
    y = y + b_ref[...]
    o_ref[0] = jnp.maximum(y * s_post_ref[0] + t_post_ref[0], 0.0)


def _conv1x1_residual_kernel(a_ref, w_ref, b_ref, r_ref, o_ref):
    # 1x1 conv + bias + residual add fused (no extra HBM round trip for the add).
    y = jnp.dot(a_ref[0], w_ref[...], preferred_element_type=jnp.float32)
    o_ref[0] = y + b_ref[...] + r_ref[0]


# ----------------------------------------------------------------------------- pallas wrappers

def _tile_rows(m, limit=1024):
    if m <= limit:
        return m
    for t in range(limit, 7, -1):
        if m % t == 0 and t % 8 == 0:
            return t
    return m


def fused_conv1x1_pre_post(x, s_pre, t_pre, w, b, s_post, t_post):
    N, M, Cin = x.shape
    Cout = w.shape[1]
    TM = _tile_rows(M)
    return pl.pallas_call(
        _conv1x1_pre_post_kernel,
        out_shape=jax.ShapeDtypeStruct((N, M, Cout), jnp.float32),
        grid=(N, M // TM),
        in_specs=[
            pl.BlockSpec((1, TM, Cin), lambda n, m: (n, m, 0)),
            pl.BlockSpec((1, 1, Cin), lambda n, m: (n, 0, 0)),
            pl.BlockSpec((1, 1, Cin), lambda n, m: (n, 0, 0)),
            pl.BlockSpec((Cin, Cout), lambda n, m: (0, 0)),
            pl.BlockSpec((1, Cout), lambda n, m: (0, 0)),
            pl.BlockSpec((1, 1, Cout), lambda n, m: (n, 0, 0)),
            pl.BlockSpec((1, 1, Cout), lambda n, m: (n, 0, 0)),
        ],
        out_specs=pl.BlockSpec((1, TM, Cout), lambda n, m: (n, m, 0)),
        compiler_params=pltpu.CompilerParams(
            dimension_semantics=("parallel", "parallel"),
            vmem_limit_bytes=_VMEM_LIMIT),
    )(x, s_pre, t_pre, w, b, s_post, t_post)


def fused_conv3x3_post(a, w9, b, s_post, t_post, mask_l, mask_r, *, w_pix):
    N, M, Cin = a.shape
    Cout = w9.shape[1]
    pad = ((w_pix + 1 + 7) // 8) * 8          # 8-aligned zero border (>= W+1 rows)
    kernel = functools.partial(_conv3x3_post_kernel, w_pix=w_pix, pad=pad)
    return pl.pallas_call(
        kernel,
        out_shape=jax.ShapeDtypeStruct((N, M, Cout), jnp.float32),
        grid=(N,),
        in_specs=[
            pl.BlockSpec((1, M, Cin), lambda n: (n, 0, 0)),
            pl.BlockSpec((9 * Cin, Cout), lambda n: (0, 0)),
            pl.BlockSpec((1, Cout), lambda n: (0, 0)),
            pl.BlockSpec((1, 1, Cout), lambda n: (n, 0, 0)),
            pl.BlockSpec((1, 1, Cout), lambda n: (n, 0, 0)),
            pl.BlockSpec((M, 1), lambda n: (0, 0)),
            pl.BlockSpec((M, 1), lambda n: (0, 0)),
        ],
        out_specs=pl.BlockSpec((1, M, Cout), lambda n: (n, 0, 0)),
        scratch_shapes=[
            pltpu.VMEM((M + 2 * pad, Cin), jnp.float32),   # padded flat activation
            pltpu.VMEM((M, 9 * Cin), jnp.float32),         # packed im2col operand
        ],
        compiler_params=pltpu.CompilerParams(
            dimension_semantics=("parallel",),
            vmem_limit_bytes=_VMEM_LIMIT),
    )(a, w9, b, s_post, t_post, mask_l, mask_r)


def fused_conv1x1_residual(a, w, b, res):
    N, M, Cin = a.shape
    Cout = w.shape[1]
    TM = _tile_rows(M)
    return pl.pallas_call(
        _conv1x1_residual_kernel,
        out_shape=jax.ShapeDtypeStruct((N, M, Cout), jnp.float32),
        grid=(N, M // TM),
        in_specs=[
            pl.BlockSpec((1, TM, Cin), lambda n, m: (n, m, 0)),
            pl.BlockSpec((Cin, Cout), lambda n, m: (0, 0)),
            pl.BlockSpec((1, Cout), lambda n, m: (0, 0)),
            pl.BlockSpec((1, TM, Cout), lambda n, m: (n, m, 0)),
        ],
        out_specs=pl.BlockSpec((1, TM, Cout), lambda n, m: (n, m, 0)),
        compiler_params=pltpu.CompilerParams(
            dimension_semantics=("parallel", "parallel"),
            vmem_limit_bytes=_VMEM_LIMIT),
    )(a, w, b, res)


# ----------------------------------------------------------------------------- glue

def upsample_nearest2x_nhwc(x):
    return jnp.repeat(jnp.repeat(x, 2, axis=1), 2, axis=2)


def interp_stats(means, vars_, truncation, n_stats):
    # exact semantics of BigGAN's truncation-interpolated running stats
    step = 1.0 / (n_stats - 1)
    coef, start = math.modf(truncation / step)
    start = int(start)
    if coef != 0.0:
        mean = means[start] * coef + means[start + 1] * (1.0 - coef)
        var = vars_[start] * coef + vars_[start + 1] * (1.0 - coef)
    else:
        mean = means[start]
        var = vars_[start]
    return mean, var


def bn_scale_shift(bn, cond, truncation, eps, n_stats):
    # Fold (interpolated running stats + conditional gamma/beta) into a per-sample,
    # per-channel affine y = x*scale + shift.  The tiny projections stay in XLA.
    mean, var = interp_stats(bn["means"], bn["vars"], truncation, n_stats)
    gamma = 1.0 + cond @ bn["w_scale"].T          # (N, C)
    beta = cond @ bn["w_offset"].T                # (N, C)
    scale = gamma / jnp.sqrt(var + eps)           # (N, C)
    shift = beta - mean * scale                   # (N, C)
    N, C = scale.shape
    return scale.reshape(N, 1, C), shift.reshape(N, 1, C)


def gen_block_forward(params, x_nchw, cond, truncation, *, up_sample, eps, n_stats):
    x = jnp.transpose(x_nchw, (0, 2, 3, 1))       # NCHW -> NHWC
    N, H, W, Cin = x.shape
    x0 = x
    mid = params["conv_0"]["w"].shape[0]
    out_size = params["conv_3"]["w"].shape[0]
    drop_channels = Cin != out_size

    # fold every conditional BN into scale/shift pairs
    s0, t0 = bn_scale_shift(params["bn_0"], cond, truncation, eps, n_stats)
    s1, t1 = bn_scale_shift(params["bn_1"], cond, truncation, eps, n_stats)
    s2, t2 = bn_scale_shift(params["bn_2"], cond, truncation, eps, n_stats)
    s3, t3 = bn_scale_shift(params["bn_3"], cond, truncation, eps, n_stats)

    # weight reshapes: OIHW -> matmul form
    w0 = jnp.transpose(params["conv_0"]["w"][:, :, 0, 0], (1, 0))          # (Cin, mid)
    b0 = params["conv_0"]["b"].reshape(1, mid)
    w1 = jnp.transpose(params["conv_1"]["w"], (2, 3, 1, 0)).reshape(9 * mid, mid)
    b1 = params["conv_1"]["b"].reshape(1, mid)
    w2 = jnp.transpose(params["conv_2"]["w"], (2, 3, 1, 0)).reshape(9 * mid, mid)
    b2 = params["conv_2"]["b"].reshape(1, mid)
    w3 = jnp.transpose(params["conv_3"]["w"][:, :, 0, 0], (1, 0))          # (mid, out)
    b3 = params["conv_3"]["b"].reshape(1, out_size)

    # stage 1: relu(bn_0) -> conv_0 -> relu(bn_1), one fused kernel
    h = fused_conv1x1_pre_post(x.reshape(N, H * W, Cin), s0, t0, w0, b0, s1, t1)

    Hc, Wc = H, W
    if up_sample:
        h = upsample_nearest2x_nhwc(h.reshape(N, H, W, mid))
        Hc, Wc = 2 * H, 2 * W
        h = h.reshape(N, Hc * Wc, mid)
    M = Hc * Wc

    # column-boundary masks for the flat-shift tap extraction (shared by both 3x3 convs)
    col = jnp.arange(M, dtype=jnp.int32) % Wc
    mask_l = (col >= 1).astype(jnp.float32).reshape(M, 1)
    mask_r = (col <= Wc - 2).astype(jnp.float32).reshape(M, 1)

    # stage 2: conv_1 (3x3) -> relu(bn_2), fused
    h = fused_conv3x3_post(h, w1, b1, s2, t2, mask_l, mask_r, w_pix=Wc)
    # stage 3: conv_2 (3x3) -> relu(bn_3), fused
    h = fused_conv3x3_post(h, w2, b2, s3, t3, mask_l, mask_r, w_pix=Wc)

    # residual path (channel drop + upsample are pure indexing/replication glue)
    if drop_channels:
        x0 = x0[..., : x0.shape[-1] // 2]
    if up_sample:
        x0 = upsample_nearest2x_nhwc(x0)
    res = x0.reshape(N, M, x0.shape[-1])

    # stage 4: conv_3 (1x1) + residual add, fused
    out = fused_conv1x1_residual(h, w3, b3, res)              # (N, M, out)
    out = out.reshape(N, Hc, Wc, out_size)
    return jnp.transpose(out, (0, 3, 1, 2))                    # NHWC -> NCHW


# ----------------------------------------------------------------------------- params (synthetic, deterministic)

def spectral_norm_2d(w2d, n_iter=5):
    u = jnp.full((w2d.shape[0],), 1.0 / math.sqrt(w2d.shape[0]), w2d.dtype)
    v = w2d.T @ u
    for _ in range(n_iter):
        v = w2d.T @ u
        v = v / (jnp.linalg.norm(v) + 1e-12)
        u = w2d @ v
        u = u / (jnp.linalg.norm(u) + 1e-12)
    sigma = u @ (w2d @ v)
    return w2d / sigma


def spectral_norm_conv(w_oihw, n_iter=5):
    cout = w_oihw.shape[0]
    return spectral_norm_2d(w_oihw.reshape(cout, -1), n_iter).reshape(w_oihw.shape)


def make_bn_params(key, num_features, cond_dim, n_stats):
    k1, k2, k3, k4 = jax.random.split(key, 4)
    return dict(
        means=0.1 * jax.random.normal(k1, (n_stats, num_features), jnp.float32),
        vars=1.0 + 0.1 * jax.random.uniform(k2, (n_stats, num_features), jnp.float32),
        w_scale=spectral_norm_2d(0.1 * jax.random.normal(k3, (num_features, cond_dim), jnp.float32)),
        w_offset=spectral_norm_2d(0.1 * jax.random.normal(k4, (num_features, cond_dim), jnp.float32)),
    )


def make_conv_params(key, cin, cout, ksize):
    k1, k2 = jax.random.split(key)
    w = spectral_norm_conv(0.2 * jax.random.normal(k1, (cout, cin, ksize, ksize), jnp.float32))
    b = 0.1 * jax.random.normal(k2, (cout,), jnp.float32)
    return dict(w=w, b=b)


def init_gen_block_params(key, in_size, out_size, cond_dim, reduction_factor, n_stats):
    middle = in_size // reduction_factor
    ks = jax.random.split(key, 8)
    return {
        "bn_0": make_bn_params(ks[0], in_size, cond_dim, n_stats),
        "conv_0": make_conv_params(ks[1], in_size, middle, 1),
        "bn_1": make_bn_params(ks[2], middle, cond_dim, n_stats),
        "conv_1": make_conv_params(ks[3], middle, middle, 3),
        "bn_2": make_bn_params(ks[4], middle, cond_dim, n_stats),
        "conv_2": make_conv_params(ks[5], middle, middle, 3),
        "bn_3": make_bn_params(ks[6], middle, cond_dim, n_stats),
        "conv_3": make_conv_params(ks[7], middle, out_size, 1),
    }


# ----------------------------------------------------------------------------- pure-JAX reference (correctness)

def ref_forward(params, x_nchw, cond, truncation, *, up_sample, eps, n_stats):
    x = jnp.transpose(x_nchw, (0, 2, 3, 1))
    x0 = x

    def cbn_relu(x, bn):
        mean, var = interp_stats(bn["means"], bn["vars"], truncation, n_stats)
        gamma = 1.0 + cond @ bn["w_scale"].T
        beta = cond @ bn["w_offset"].T
        y = (x - mean) / jnp.sqrt(var + eps) * gamma[:, None, None, :] + beta[:, None, None, :]
        return jnp.maximum(y, 0.0)

    def conv(x, p, pad):
        w = jnp.transpose(p["w"], (2, 3, 1, 0))  # OIHW -> HWIO
        y = lax.conv_general_dilated(
            x, w, (1, 1), [(pad, pad), (pad, pad)],
            dimension_numbers=("NHWC", "HWIO", "NHWC"),
            precision=lax.Precision.HIGHEST)
        return y + p["b"]

    def up(x):
        return jnp.repeat(jnp.repeat(x, 2, axis=1), 2, axis=2)

    x = cbn_relu(x, params["bn_0"]); x = conv(x, params["conv_0"], 0)
    x = cbn_relu(x, params["bn_1"])
    if up_sample:
        x = up(x)
    x = conv(x, params["conv_1"], 1)
    x = cbn_relu(x, params["bn_2"]); x = conv(x, params["conv_2"], 1)
    x = cbn_relu(x, params["bn_3"]); x = conv(x, params["conv_3"], 0)
    if x0.shape[-1] != x.shape[-1]:
        x0 = x0[..., : x0.shape[-1] // 2]
    if up_sample:
        x0 = up(x0)
    return jnp.transpose(x + x0, (0, 3, 1, 2))


# ----------------------------------------------------------------------------- main

if __name__ == "__main__":
    N, in_size, out_size = 2, 16, 8
    H = W = 8
    cond_dim = 32
    n_stats = 51
    eps = 1e-12
    up_sample = True
    truncation = 0.43

    key = jax.random.PRNGKey(0)
    kx, kc, kp = jax.random.split(key, 3)
    x_nchw = jax.random.normal(kx, (N, in_size, H, W), jnp.float32)
    cond = jax.random.normal(kc, (N, cond_dim), jnp.float32)

    params = init_gen_block_params(kp, in_size, out_size, cond_dim,
                                   reduction_factor=4, n_stats=n_stats)

    out = gen_block_forward(params, x_nchw, cond, truncation,
                            up_sample=up_sample, eps=eps, n_stats=n_stats)
    out = jax.block_until_ready(out)

    ref = jax.block_until_ready(
        ref_forward(params, x_nchw, cond, truncation,
                    up_sample=up_sample, eps=eps, n_stats=n_stats))

    assert out.shape == (N, out_size, 2 * H, 2 * W), out.shape
    max_err = float(jnp.max(jnp.abs(out - ref)))
    assert max_err < 5e-2, f"max abs err {max_err}"
    print("KERNEL_OK")
</pallas_src>

<mosaic_0001>
module attributes {stable_mosaic.version = 11 : i64} {
  func.func @_conv1x1_pre_post_kernel(%arg0: i32, %arg1: i32, %arg2: memref<1x64x16xf32, #tpu.memory_space<vmem>>, %arg3: memref<1x1x16xf32, #tpu.memory_space<vmem>>, %arg4: memref<1x1x16xf32, #tpu.memory_space<vmem>>, %arg5: memref<16x4xf32, #tpu.memory_space<vmem>>, %arg6: memref<1x4xf32, #tpu.memory_space<vmem>>, %arg7: memref<1x1x4xf32, #tpu.memory_space<vmem>>, %arg8: memref<1x1x4xf32, #tpu.memory_space<vmem>>, %arg9: memref<1x64x4xf32, #tpu.memory_space<vmem>>) attributes {dimension_semantics = [#tpu.dimension_semantics<parallel>, #tpu.dimension_semantics<parallel>], iteration_bounds = array<i64: 2, 1>, scalar_prefetch = 0 : i64, scratch_operands = 0 : i64, tpu.core_type = #tpu.core_type<tc>, window_params = [{transform_indices = @transform_0, window_bounds = array<i64: 1, 64, 16>}, {transform_indices = @transform_1, window_bounds = array<i64: 1, 1, 16>}, {transform_indices = @transform_2, window_bounds = array<i64: 1, 1, 16>}, {pipeline_mode = #tpu.pipeline_mode<synchronous>, transform_indices = @transform_3, window_bounds = array<i64: 16, 4>}, {pipeline_mode = #tpu.pipeline_mode<synchronous>, transform_indices = @transform_4, window_bounds = array<i64: 1, 4>}, {transform_indices = @transform_5, window_bounds = array<i64: 1, 1, 4>}, {transform_indices = @transform_6, window_bounds = array<i64: 1, 1, 4>}, {transform_indices = @transform_7, window_bounds = array<i64: 1, 64, 4>}]} {
    %c0 = arith.constant 0 : index
    %c0_0 = arith.constant 0 : index
    %c0_1 = arith.constant 0 : index
    %0 = vector.load %arg2[%c0, %c0_0, %c0_1] : memref<1x64x16xf32, #tpu.memory_space<vmem>>, vector<1x64x16xf32>
    %1 = vector.shape_cast %0 : vector<1x64x16xf32> to vector<64x16xf32>
    %c0_2 = arith.constant 0 : index
    %c0_3 = arith.constant 0 : index
    %c0_4 = arith.constant 0 : index
    %2 = vector.load %arg3[%c0_2, %c0_3, %c0_4] : memref<1x1x16xf32, #tpu.memory_space<vmem>>, vector<1x1x16xf32>
    %3 = vector.shape_cast %2 : vector<1x1x16xf32> to vector<1x16xf32>
    %4 = vector.broadcast %3 : vector<1x16xf32> to vector<64x16xf32>
    %5 = arith.mulf %1, %4 : vector<64x16xf32>
    %c0_5 = arith.constant 0 : index
    %c0_6 = arith.constant 0 : index
    %c0_7 = arith.constant 0 : index
    %6 = vector.load %arg4[%c0_5, %c0_6, %c0_7] : memref<1x1x16xf32, #tpu.memory_space<vmem>>, vector<1x1x16xf32>
    %7 = vector.shape_cast %6 : vector<1x1x16xf32> to vector<1x16xf32>
    %8 = vector.broadcast %7 : vector<1x16xf32> to vector<64x16xf32>
    %9 = arith.addf %5, %8 : vector<64x16xf32>
    %cst = arith.constant 0.000000e+00 : f32
    %10 = vector.broadcast %cst : f32 to vector<64x16xf32>
    %11 = arith.maximumf %9, %10 : vector<64x16xf32>
    %c0_8 = arith.constant 0 : index
    %c0_9 = arith.constant 0 : index
    %12 = vector.load %arg5[%c0_8, %c0_9] : memref<16x4xf32, #tpu.memory_space<vmem>>, vector<16x4xf32>
    %cst_10 = arith.constant dense<0.000000e+00> : vector<64x4xf32>
    %13 = tpu.matmul %11, %12, %cst_10 {dimension_numbers = #tpu.dot_dimension_numbers<[1], [0], [0], [1], [0, 0, 1, 1], [], []>} : vector<64x16xf32>, vector<16x4xf32>, vector<64x4xf32> -> vector<64x4xf32>
    %c0_11 = arith.constant 0 : index
    %c0_12 = arith.constant 0 : index
    %14 = vector.load %arg6[%c0_11, %c0_12] : memref<1x4xf32, #tpu.memory_space<vmem>>, vector<1x4xf32>
    %15 = vector.broadcast %14 : vector<1x4xf32> to vector<64x4xf32>
    %16 = arith.addf %13, %15 : vector<64x4xf32>
    %c0_13 = arith.constant 0 : index
    %c0_14 = arith.constant 0 : index
    %c0_15 = arith.constant 0 : index
    %17 = vector.load %arg7[%c0_13, %c0_14, %c0_15] : memref<1x1x4xf32, #tpu.memory_space<vmem>>, vector<1x1x4xf32>
    %18 = vector.shape_cast %17 : vector<1x1x4xf32> to vector<1x4xf32>
    %19 = vector.broadcast %18 : vector<1x4xf32> to vector<64x4xf32>
    %20 = arith.mulf %16, %19 : vector<64x4xf32>
    %c0_16 = arith.constant 0 : index
    %c0_17 = arith.constant 0 : index
    %c0_18 = arith.constant 0 : index
    %21 = vector.load %arg8[%c0_16, %c0_17, %c0_18] : memref<1x1x4xf32, #tpu.memory_space<vmem>>, vector<1x1x4xf32>
    %22 = vector.shape_cast %21 : vector<1x1x4xf32> to vector<1x4xf32>
    %23 = vector.broadcast %22 : vector<1x4xf32> to vector<64x4xf32>
    %24 = arith.addf %20, %23 : vector<64x4xf32>
    %cst_19 = arith.constant 0.000000e+00 : f32
    %25 = vector.broadcast %cst_19 : f32 to vector<64x4xf32>
    %26 = arith.maximumf %24, %25 : vector<64x4xf32>
    %c0_20 = arith.constant 0 : index
    %c0_21 = arith.constant 0 : index
    %c0_22 = arith.constant 0 : index
    %27 = vector.load %arg9[%c0_20, %c0_21, %c0_22] : memref<1x64x4xf32, #tpu.memory_space<vmem>>, vector<1x64x4xf32>
    %28 = vector.shape_cast %27 : vector<1x64x4xf32> to vector<64x4xf32>
    %29 = vector.shape_cast %26 : vector<64x4xf32> to vector<1x64x4xf32>
    tpu.vector_store %arg9[%c0_20, %c0_21, %c0_22], %29 {strides = array<i32>} : memref<1x64x4xf32, #tpu.memory_space<vmem>>, vector<1x64x4xf32>,
    return
  }
  func.func @transform_0(%arg0: i32, %arg1: i32) -> (i32, i32, i32) {
    %c0_i32 = arith.constant 0 : i32
    %c0_i32_0 = arith.constant 0 : i32
    return %arg0, %arg1, %c0_i32 : i32, i32, i32
  }
  func.func @transform_1(%arg0: i32, %arg1: i32) -> (i32, i32, i32) {
    %c0_i32 = arith.constant 0 : i32
    %c0_i32_0 = arith.constant 0 : i32
    %c0_i32_1 = arith.constant 0 : i32
    return %arg0, %c0_i32, %c0_i32_0 : i32, i32, i32
  }
  func.func @transform_2(%arg0: i32, %arg1: i32) -> (i32, i32, i32) {
    %c0_i32 = arith.constant 0 : i32
    %c0_i32_0 = arith.constant 0 : i32
    %c0_i32_1 = arith.constant 0 : i32
    return %arg0, %c0_i32, %c0_i32_0 : i32, i32, i32
  }
  func.func @transform_3(%arg0: i32, %arg1: i32) -> (i32, i32) {
    %c0_i32 = arith.constant 0 : i32
    %c0_i32_0 = arith.constant 0 : i32
    %c0_i32_1 = arith.constant 0 : i32
    return %c0_i32, %c0_i32_0 : i32, i32
  }
  func.func @transform_4(%arg0: i32, %arg1: i32) -> (i32, i32) {
    %c0_i32 = arith.constant 0 : i32
    %c0_i32_0 = arith.constant 0 : i32
    %c0_i32_1 = arith.constant 0 : i32
    return %c0_i32, %c0_i32_0 : i32, i32
  }
  func.func @transform_5(%arg0: i32, %arg1: i32) -> (i32, i32, i32) {
    %c0_i32 = arith.constant 0 : i32
    %c0_i32_0 = arith.constant 0 : i32
    %c0_i32_1 = arith.constant 0 : i32
    return %arg0, %c0_i32, %c0_i32_0 : i32, i32, i32
  }
  func.func @transform_6(%arg0: i32, %arg1: i32) -> (i32, i32, i32) {
    %c0_i32 = arith.constant 0 : i32
    %c0_i32_0 = arith.constant 0 : i32
    %c0_i32_1 = arith.constant 0 : i32
    return %arg0, %c0_i32, %c0_i32_0 : i32, i32, i32
  }
  func.func @transform_7(%arg0: i32, %arg1: i32) -> (i32, i32, i32) {
    %c0_i32 = arith.constant 0 : i32
    %c0_i32_0 = arith.constant 0 : i32
    return %arg0, %arg1, %c0_i32 : i32, i32, i32
  }
}

</mosaic_0001>

<llo_original>
// kernel: tpu_custom_call.1
$region0: #{tpu_custom_call.1}
  #allocation0 [shape = 'u32[]', space=smem, size = 0x4, offset = 0x4, fixed_abs, tag = 'smem constant byte address 0x4 - core index']
  #allocation1 [shape = 'u32[144,128]{1,0:T(1,128)}', space=vmem, size = 0x12000, scoped, tag = 'internal scratch']
  %s0 = inlined_call_operand.vmem [shape: f32[2,64,16], index: 0, kind: input, shape index: {}]
  %s1 = inlined_call_operand.vmem [shape: f32[2,1,16], index: 1, kind: input, shape index: {}]
  %s2 = inlined_call_operand.vmem [shape: f32[2,1,16], index: 2, kind: input, shape index: {}]
  %s3 = inlined_call_operand.vmem [shape: f32[16,4], index: 3, kind: input, shape index: {}]
  %s4 = inlined_call_operand.vmem [shape: f32[1,4], index: 4, kind: input, shape index: {}]
  %s5 = inlined_call_operand.vmem [shape: f32[2,1,4], index: 5, kind: input, shape index: {}]
  %s6 = inlined_call_operand.vmem [shape: f32[2,1,4], index: 6, kind: input, shape index: {}]
  %s7 = inlined_call_operand.vmem [shape: f32[2,64,4], index: 7, kind: output, shape index: {}]
  %s8 = sld [smem:[#allocation0]]
  $region61: #{tpu_custom_call.1} parent=0
    _
  %s10 = ssub.s32 1, %s8
  %s11 = scalar_select 0, %s10, %s8
  loop: start=0, step=1, limit=4
  $region2: #{tpu_custom_call.1} parent=0 // loop_pre_header
    _
  $region3: #{tpu_custom_call.1} parent=0 // loop_header
    %s13 = sphi 0, %s17
    %p14 = scmp.ge.s32.totalorder %s13, 4
    %s20 = sphi 0, %s32
    %s21 = sphi 0, %s28
    %s22 = sphi 0, %s20
    %s23 = sphi 0, %s21
    %s24 = sphi 0, %s22
    %s25 = sphi 0, %s23
    %s37 = sphi 0, %s39
    %s40 = sphi 0, %s37
    %s41 = sphi 0, %s40
    %s57 = sphi 0, %s41
    %s63 = sphi 0, %s65
    %s66 = sphi 0, %s63
    %s67 = sphi 0, %s66
    %s83 = sphi 0, %s67
    %s89 = sphi 0, %s91
    %s92 = sphi 0, %s89
    %s93 = sphi 0, %s92
    %s109 = sphi 0, %s93
    %s113 = sphi 0, %s113
    %s115 = sphi 0, %s113
    %s116 = sphi 0, %s115
    %s130 = sphi 0, %s116
    %s134 = sphi 0, %s134
    %s136 = sphi 0, %s134
    %s137 = sphi 0, %s136
    %s151 = sphi 0, %s137
    %s157 = sphi 0, %s159
    %s160 = sphi 0, %s157
    %s161 = sphi 0, %s160
    %s177 = sphi 0, %s161
    %s183 = sphi 0, %s185
    %s186 = sphi 0, %s183
    %s187 = sphi 0, %s186
    %s203 = sphi 0, %s187
    %s211 = sphi 0, %s213
    %s214 = sphi 0, %s211
    %s215 = sphi 0, %s214
    %s231 = sphi 0, %s215
  $region4: #{tpu_custom_call.1} parent=0 // loop_header_branch
    %16 = sbr.rel (%p14) target = $region8
  $region5: #{tpu_custom_call.1} parent=0 // loop_body
    %s18 = ssub.s32 %s13, 1
    %s19 = ssub.s32 %s13, 2
    %s26 = sadd.s32 1, %s21
    %p27 = scmp.ge.s32.totalorder %s26, 1
    %s28 = scalar_select %p27, 0, %s26
    %s29 = sadd.s32 1, %s20
    %s30 = scalar_select %p27, %s29, %s20
    %p31 = scmp.ge.s32.totalorder %s30, 2
    %s32 = scalar_select %p31, 0, %s30
    %s33 = ssub.s32 %s20, %s32
    %s34 = ssub.s32 %s21, %s28
    %s35 = sor.u32 %s33, %s34
    %p36 = scmp.eq.s32.totalorder %s35, 0
    %s38 = sadd.s32 %s37, 1
    %s39 = scalar_select %p36, %s37, %s38
    %p42 = pneg %p36
    %p43 = scmp.eq.s32.totalorder %s13, 1
    %p44 = por %p42, %p43
    %p45 = scmp.ne.s32.totalorder %s37, %s40
    %p46 = scmp.eq.s32.totalorder %s13, 0
    %p47 = por %p45, %p46
    %p48 = scmp.ne.s32.totalorder %s37, %s40
    %p49 = scmp.eq.s32.totalorder %s18, 1
    %p50 = por %p48, %p49
    %p51 = scmp.ne.s32.totalorder %s40, %s41
    %p52 = scmp.eq.s32.totalorder %s18, 0
    %p53 = por %p51, %p52
    %p54 = scmp.ne.s32.totalorder %s40, %s41
    %p55 = scmp.eq.s32.totalorder %s19, 1
    %p56 = por %p54, %p55
    %p58 = scmp.ne.s32.totalorder %s41, %s57
    %p59 = scmp.eq.s32.totalorder %s19, 0
    %p60 = por %p58, %p59
    %s61 = ssub.s32 %s20, %s32
    %p62 = scmp.eq.s32.totalorder %s61, 0
    %s64 = sadd.s32 %s63, 1
    %s65 = scalar_select %p62, %s63, %s64
    %p68 = pneg %p62
    %p69 = scmp.eq.s32.totalorder %s13, 1
    %p70 = por %p68, %p69
    %p71 = scmp.ne.s32.totalorder %s63, %s66
    %p72 = scmp.eq.s32.totalorder %s13, 0
    %p73 = por %p71, %p72
    %p74 = scmp.ne.s32.totalorder %s63, %s66
    %p75 = scmp.eq.s32.totalorder %s18, 1
    %p76 = por %p74, %p75
    %p77 = scmp.ne.s32.totalorder %s66, %s67
    %p78 = scmp.eq.s32.totalorder %s18, 0
    %p79 = por %p77, %p78
    %p80 = scmp.ne.s32.totalorder %s66, %s67
    %p81 = scmp.eq.s32.totalorder %s19, 1
    %p82 = por %p80, %p81
    %p84 = scmp.ne.s32.totalorder %s67, %s83
    %p85 = scmp.eq.s32.totalorder %s19, 0
    %p86 = por %p84, %p85
    %s87 = ssub.s32 %s20, %s32
    %p88 = scmp.eq.s32.totalorder %s87, 0
    %s90 = sadd.s32 %s89, 1
    %s91 = scalar_select %p88, %s89, %s90
    %p94 = pneg %p88
    %p95 = scmp.eq.s32.totalorder %s13, 1
    %p96 = por %p94, %p95
    %p97 = scmp.ne.s32.totalorder %s89, %s92
    %p98 = scmp.eq.s32.totalorder %s13, 0
    %p99 = por %p97, %p98
    %p100 = scmp.ne.s32.totalorder %s89, %s92
    %p101 = scmp.eq.s32.totalorder %s18, 1
    %p102 = por %p100, %p101
    %p103 = scmp.ne.s32.totalorder %s92, %s93
    %p104 = scmp.eq.s32.totalorder %s18, 0
    %p105 = por %p103, %p104
    %p106 = scmp.ne.s32.totalorder %s92, %s93
    %p107 = scmp.eq.s32.totalorder %s19, 1
    %p108 = por %p106, %p107
    %p110 = scmp.ne.s32.totalorder %s93, %s109
    %p111 = scmp.eq.s32.totalorder %s19, 0
    %p112 = por %p110, %p111
    %s114 = sadd.s32 %s113, 1
    %p117 = scmp.eq.s32.totalorder %s13, 1
    %p118 = scmp.ne.s32.totalorder %s113, %s115
    %p119 = scmp.eq.s32.totalorder %s13, 0
    %p120 = por %p118, %p119
    %p121 = scmp.ne.s32.totalorder %s113, %s115
    %p122 = scmp.eq.s32.totalorder %s18, 1
    %p123 = por %p121, %p122
    %p124 = scmp.ne.s32.totalorder %s115, %s116
    %p125 = scmp.eq.s32.totalorder %s18, 0
    %p126 = por %p124, %p125
    %p127 = scmp.ne.s32.totalorder %s115, %s116
    %p128 = scmp.eq.s32.totalorder %s19, 1
    %p129 = por %p127, %p128
    %p131 = scmp.ne.s32.totalorder %s116, %s130
    %p132 = scmp.eq.s32.totalorder %s19, 0
    %p133 = por %p131, %p132
    %s135 = sadd.s32 %s134, 1
    %p138 = scmp.eq.s32.totalorder %s13, 1
    %p139 = scmp.ne.s32.totalorder %s134, %s136
    %p140 = scmp.eq.s32.totalorder %s13, 0
    %p141 = por %p139, %p140
    %p142 = scmp.ne.s32.totalorder %s134, %s136
    %p143 = scmp.eq.s32.totalorder %s18, 1
    %p144 = por %p142, %p143
    %p145 = scmp.ne.s32.totalorder %s136, %s137
    %p146 = scmp.eq.s32.totalorder %s18, 0
    %p147 = por %p145, %p146
    %p148 = scmp.ne.s32.totalorder %s136, %s137
    %p149 = scmp.eq.s32.totalorder %s19, 1
    %p150 = por %p148, %p149
    %p152 = scmp.ne.s32.totalorder %s137, %s151
    %p153 = scmp.eq.s32.totalorder %s19, 0
    %p154 = por %p152, %p153
    %s155 = ssub.s32 %s20, %s32
    %p156 = scmp.eq.s32.totalorder %s155, 0
    %s158 = sadd.s32 %s157, 1
    %s159 = scalar_select %p156, %s157, %s158
    %p162 = pneg %p156
    %p163 = scmp.eq.s32.totalorder %s13, 1
    %p164 = por %p162, %p163
    %p165 = scmp.ne.s32.totalorder %s157, %s160
    %p166 = scmp.eq.s32.totalorder %s13, 0
    %p167 = por %p165, %p166
    %p168 = scmp.ne.s32.totalorder %s157, %s160
    %p169 = scmp.eq.s32.totalorder %s18, 1
    %p170 = por %p168, %p169
    %p171 = scmp.ne.s32.totalorder %s160, %s161
    %p172 = scmp.eq.s32.totalorder %s18, 0
    %p173 = por %p171, %p172
    %p174 = scmp.ne.s32.totalorder %s160, %s161
    %p175 = scmp.eq.s32.totalorder %s19, 1
    %p176 = por %p174, %p175
    %p178 = scmp.ne.s32.totalorder %s161, %s177
    %p179 = scmp.eq.s32.totalorder %s19, 0
    %p180 = por %p178, %p179
    %s181 = ssub.s32 %s20, %s32
    %p182 = scmp.eq.s32.totalorder %s181, 0
    %s184 = sadd.s32 %s183, 1
    %s185 = scalar_select %p182, %s183, %s184
    %p188 = pneg %p182
    %p189 = scmp.eq.s32.totalorder %s13, 1
    %p190 = por %p188, %p189
    %p191 = scmp.ne.s32.totalorder %s183, %s186
    %p192 = scmp.eq.s32.totalorder %s13, 0
    %p193 = por %p191, %p192
    %p194 = scmp.ne.s32.totalorder %s183, %s186
    %p195 = scmp.eq.s32.totalorder %s18, 1
    %p196 = por %p194, %p195
    %p197 = scmp.ne.s32.totalorder %s186, %s187
    %p198 = scmp.eq.s32.totalorder %s18, 0
    %p199 = por %p197, %p198
    %p200 = scmp.ne.s32.totalorder %s186, %s187
    %p201 = scmp.eq.s32.totalorder %s19, 1
    %p202 = por %p200, %p201
    %p204 = scmp.ne.s32.totalorder %s187, %s203
    %p205 = scmp.eq.s32.totalorder %s19, 0
    %p206 = por %p204, %p205
    %s207 = ssub.s32 %s20, %s32
    %s208 = ssub.s32 %s21, %s28
    %s209 = sor.u32 %s207, %s208
    %p210 = scmp.eq.s32.totalorder %s209, 0
    %s212 = sadd.s32 %s211, 1
    %s213 = scalar_select %p210, %s211, %s212
    %p216 = pneg %p210
    %p217 = scmp.eq.s32.totalorder %s13, 1
    %p218 = por %p216, %p217
    %p219 = scmp.ne.s32.totalorder %s211, %s214
    %p220 = scmp.eq.s32.totalorder %s13, 0
    %p221 = por %p219, %p220
    %p222 = scmp.ne.s32.totalorder %s211, %s214
    %p223 = scmp.eq.s32.totalorder %s18, 1
    %p224 = por %p222, %p223
    %p225 = scmp.ne.s32.totalorder %s214, %s215
    %p226 = scmp.eq.s32.totalorder %s18, 0
    %p227 = por %p225, %p226
    %p228 = scmp.ne.s32.totalorder %s214, %s215
    %p229 = scmp.eq.s32.totalorder %s19, 1
    %p230 = por %p228, %p229
    %p232 = scmp.ne.s32.totalorder %s215, %s231
    %p233 = scmp.eq.s32.totalorder %s19, 0
    %p234 = por %p232, %p233
    %p235 = scmp.le.s32.totalorder 1, %s13
    %p236 = scmp.lt.s32.totalorder %s13, 3
    %p237 = pnand %p235, %p236
    %p238 = pneg %p237
    // Predicated region
    $region9: #{tpu_custom_call.1} parent=5 // pred_check
      _
    $region10: #{tpu_custom_call.1} parent=5 // pred_check_branch
      %240 = sbr.rel (%p237) target = $region12
    $region11: #{tpu_custom_call.1} parent=5 // pred_region
      %s241 = ssub.s32 %s13, 1
      // Predicated region
      $region13: #{tpu_custom_call.1} parent=11 // pred_check
        %p242 = pneg %p126
      $region14: #{tpu_custom_call.1} parent=11 // pred_check_branch
        %244 = sbr.rel (%p242) target = $region16
      $region15: #{tpu_custom_call.1} parent=11 // pred_region
        _
      $region16: #{tpu_custom_call.1} parent=11 // pred_fallthru
        _
      // Predicated region
      $region17: #{tpu_custom_call.1} parent=11 // pred_check
        %p245 = pneg %p147
      $region18: #{tpu_custom_call.1} parent=11 // pred_check_branch
        %247 = sbr.rel (%p245) target = $region20
      $region19: #{tpu_custom_call.1} parent=11 // pred_region
        _
      $region20: #{tpu_custom_call.1} parent=11 // pred_fallthru
        _
    $region12: #{tpu_custom_call.1} parent=5 // pred_fallthru
      _
    %p248 = scmp.lt.s32.totalorder %s13, 2
    // Predicated region
    $region21: #{tpu_custom_call.1} parent=5 // pred_check
      %p249 = pneg %p248
    $region22: #{tpu_custom_call.1} parent=5 // pred_check_branch
      %251 = sbr.rel (%p249) target = $region24
    $region23: #{tpu_custom_call.1} parent=5 // pred_region
      // Predicated region
      $region25: #{tpu_custom_call.1} parent=23 // pred_check
        %p252 = pneg %p47
      $region26: #{tpu_custom_call.1} parent=23 // pred_check_branch
        %254 = sbr.rel (%p252) target = $region28
      $region27: #{tpu_custom_call.1} parent=23 // pred_region
        %s255 = smul.u32 8, %s21
        %p256 = scmp.lt.s32.totalorder %s20, 1
        %s257 = scalar_select %p256, %s20, 1
        %p258 = scmp.lt.s32.totalorder %s255, 7
        %s259 = scalar_select %p258, %s255, 7
        %s260 = smul.addr %s257, 8
        %s261 = sadd.s32 %s259, %s260
        %s262 = smul.addr %s261, 8
        %s263 = scalar_lea.vmem %s0, %s262
        %s264 = smul.u32 8, %s21
      $region28: #{tpu_custom_call.1} parent=23 // pred_fallthru
        _
      // Predicated region
      $region29: #{tpu_custom_call.1} parent=23 // pred_check
        %p265 = pneg %p73
      $region30: #{tpu_custom_call.1} parent=23 // pred_check_branch
        %267 = sbr.rel (%p265) target = $region32
      $region31: #{tpu_custom_call.1} parent=23 // pred_region
        %p268 = scmp.lt.s32.totalorder %s20, 1
        %s269 = scalar_select %p268, %s20, 1
        %s270 = scalar_lea.vmem %s1, %s269
      $region32: #{tpu_custom_call.1} parent=23 // pred_fallthru
        _
      // Predicated region
      $region33: #{tpu_custom_call.1} parent=23 // pred_check
        %p271 = pneg %p99
      $region34: #{tpu_custom_call.1} parent=23 // pred_check_branch
        %273 = sbr.rel (%p271) target = $region36
      $region35: #{tpu_custom_call.1} parent=23 // pred_region
        %p274 = scmp.lt.s32.totalorder %s20, 1
        %s275 = scalar_select %p274, %s20, 1
        %s276 = scalar_lea.vmem %s2, %s275
      $region36: #{tpu_custom_call.1} parent=23 // pred_fallthru
        _
      // Predicated region
      $region37: #{tpu_custom_call.1} parent=23 // pred_check
        %p277 = pneg %p167
      $region38: #{tpu_custom_call.1} parent=23 // pred_check_branch
        %279 = sbr.rel (%p277) target = $region40
      $region39: #{tpu_custom_call.1} parent=23 // pred_region
        %p280 = scmp.lt.s32.totalorder %s20, 1
        %s281 = scalar_select %p280, %s20, 1
        %s282 = scalar_lea.vmem %s5, %s281
      $region40: #{tpu_custom_call.1} parent=23 // pred_fallthru
        _
      // Predicated region
      $region41: #{tpu_custom_call.1} parent=23 // pred_check
        %p283 = pneg %p193
      $region42: #{tpu_custom_call.1} parent=23 // pred_check_branch
        %285 = sbr.rel (%p283) target = $region44
      $region43: #{tpu_custom_call.1} parent=23 // pred_region
        %p286 = scmp.lt.s32.totalorder %s20, 1
        %s287 = scalar_select %p286, %s20, 1
        %s288 = scalar_lea.vmem %s6, %s287
      $region44: #{tpu_custom_call.1} parent=23 // pred_fallthru
        _
    $region24: #{tpu_custom_call.1} parent=5 // pred_fallthru
      _
    %p289 = scmp.le.s32.totalorder 1, %s13
    %p290 = scmp.lt.s32.totalorder %s13, 3
    %p291 = pnand %p289, %p290
    %p292 = pneg %p291
    // Predicated region
    $region45: #{tpu_custom_call.1} parent=5 // pred_check
      _
    $region46: #{tpu_custom_call.1} parent=5 // pred_check_branch
      %294 = sbr.rel (%p291) target = $region48
    $region47: #{tpu_custom_call.1} parent=5 // pred_region
      %s295 = ssub.s32 %s13, 1
      %s296 = smul.u32 8, %s23
      %p297 = scmp.lt.s32.totalorder %s22, 1
      %s298 = scalar_select %p297, %s22, 1
      %p299 = scmp.lt.s32.totalorder %s296, 7
      %s300 = scalar_select %p299, %s296, 7
      %s301 = smul.addr %s298, 8
      %s302 = sadd.s32 %s300, %s301
      %s303 = smul.addr %s302, 8
      %s304 = scalar_lea.vmem %s0, %s303
      %p305 = pneg %p53
      %p306 = pneg %p50
      %p307 = scmp.lt.s32.totalorder %s22, 1
      %s308 = scalar_select %p307, %s22, 1
      %s309 = scalar_lea.vmem %s1, %s308
      %p310 = pneg %p79
      %p311 = pneg %p76
      %p312 = scmp.lt.s32.totalorder %s22, 1
      %s313 = scalar_select %p312, %s22, 1
      %s314 = scalar_lea.vmem %s2, %s313
      %p315 = pneg %p105
      %p316 = pneg %p102
      %p317 = pneg %p126
      %p318 = pneg %p123
      %p319 = pneg %p147
      %p320 = pneg %p144
      %p321 = scmp.lt.s32.totalorder %s22, 1
      %s322 = scalar_select %p321, %s22, 1
      %s323 = scalar_lea.vmem %s5, %s322
      %p324 = pneg %p173
      %p325 = pneg %p170
      %p326 = scmp.lt.s32.totalorder %s22, 1
      %s327 = scalar_select %p326, %s22, 1
      %s328 = scalar_lea.vmem %s6, %s327
      %p329 = pneg %p199
      %p330 = pneg %p196
      %p331 = pneg %p227
      %p332 = pneg %p224
      %s333 = smul.u32 8, %s23
      %p334 = scmp.lt.s32.totalorder %s22, 1
      %s335 = scalar_select %p334, %s22, 1
      %p336 = scmp.lt.s32.totalorder %s333, 7
      %s337 = scalar_select %p336, %s333, 7
      %s338 = smul.addr %s335, 8
      %s339 = sadd.s32 %s337, %s338
      %s340 = smul.addr %s339, 8
      %s341 = scalar_lea.vmem %s7, %s340
      %s342 = smul.u32 8, %s23
      %p343 = scmp.lt.s32.totalorder %s22, 1
      %s344 = scalar_select %p343, %s22, 1
      %p345 = scmp.lt.s32.totalorder %s342, 7
      %s346 = scalar_select %p345, %s342, 7
      %s347 = smul.addr %s344, 8
      %s348 = sadd.s32 %s346, %s347
      %s349 = smul.addr %s348, 8
      %s350 = scalar_lea.vmem %s0, %s349
      %s351 = smul.u32 8, %s23
      %p352 = scmp.lt.s32.totalorder %s22, 1
      %s353 = scalar_select %p352, %s22, 1
      %s354 = scalar_lea.vmem %s1, %s353
      %p355 = scmp.lt.s32.totalorder %s22, 1
      %s356 = scalar_select %p355, %s22, 1
      %s357 = scalar_lea.vmem %s2, %s356
      %p358 = scmp.lt.s32.totalorder %s22, 1
      %s359 = scalar_select %p358, %s22, 1
      %s360 = scalar_lea.vmem %s5, %s359
      %p361 = scmp.lt.s32.totalorder %s22, 1
      %s362 = scalar_select %p361, %s22, 1
      %s363 = scalar_lea.vmem %s6, %s362
      %s364 = smul.u32 8, %s23
      %p365 = scmp.lt.s32.totalorder %s22, 1
      %s366 = scalar_select %p365, %s22, 1
      %p367 = scmp.lt.s32.totalorder %s364, 7
      %s368 = scalar_select %p367, %s364, 7
      %s369 = smul.addr %s366, 8
      %s370 = sadd.s32 %s368, %s369
      %s371 = smul.addr %s370, 8
      %s372 = scalar_lea.vmem %s7, %s371
      %s373 = smul.u32 8, %s23
      %v374 = vld [vmem:[%s350] sm:$0xff]
      %v375 = vld [vmem:[%s350 + $0x8] sm:$0xff]
      %v376 = vld [vmem:[%s350 + $0x10] sm:$0xff]
      %v377 = vld [vmem:[%s350 + $0x18] sm:$0xff]
      %v378 = vld [vmem:[%s350 + $0x20] sm:$0xff]
      %v379 = vld [vmem:[%s350 + $0x28] sm:$0xff]
      %v380 = vld [vmem:[%s350 + $0x30] sm:$0xff]
      %v381 = vld [vmem:[%s350 + $0x38] sm:$0xff]
      %v382 = vld [vmem:[%s354] sm:$0x1]
      %v384 = vlaneseq
      %v385 = vshrl.u32 %v384, 7
      %v386 = vsub.s32 0, %v385
      %v387 = vrot.slane %v382, %v386
      %v389 = vmul.f32 %v374, %v387
      %v390 = vmul.f32 %v375, %v387
      %v391 = vmul.f32 %v376, %v387
      %v392 = vmul.f32 %v377, %v387
      %v393 = vmul.f32 %v378, %v387
      %v394 = vmul.f32 %v379, %v387
      %v395 = vmul.f32 %v380, %v387
      %v396 = vmul.f32 %v381, %v387
      %v397 = vld [vmem:[%s357] sm:$0x1]
      %v399 = vlaneseq
      %v400 = vshrl.u32 %v399, 7
      %v401 = vsub.s32 0, %v400
      %v402 = vrot.slane %v397, %v401
      %v404 = vadd.f32 %v389, %v402
      %v405 = vadd.f32 %v390, %v402
      %v406 = vadd.f32 %v391, %v402
      %v407 = vadd.f32 %v392, %v402
      %v408 = vadd.f32 %v393, %v402
      %v409 = vadd.f32 %v394, %v402
      %v410 = vadd.f32 %v395, %v402
      %v411 = vadd.f32 %v396, %v402
      %v412 = vmax.f32 %v404, 0.0
      %v413 = vmax.f32 %v405, 0.0
      %v414 = vmax.f32 %v406, 0.0
      %v415 = vmax.f32 %v407, 0.0
      %v416 = vmax.f32 %v408, 0.0
      %v417 = vmax.f32 %v409, 0.0
      %v418 = vmax.f32 %v410, 0.0
      %v419 = vmax.f32 %v411, 0.0
      %v420 = vld [vmem:[%s3] sm:$0xff]
      %v421 = vld [vmem:[%s3 + $0x8] sm:$0xff]
      %v422 = vld [vmem:[%s4] sm:$0x1]
      %v424 = vlaneseq
      %v425 = vshrl.u32 %v424, 7
      %v426 = vsub.s32 0, %v425
      %v427 = vrot.slane %v422, %v426
      %vm429 = vcmask 130048
      %v431 = vsel %vm429, %v412, 0
      %v434 = vsel %vm429, %v413, 0
      %v437 = vsel %vm429, %v414, 0
      %v440 = vsel %vm429, %v415, 0
      %v443 = vsel %vm429, %v416, 0
      %v446 = vsel %vm429, %v417, 0
      %v449 = vsel %vm429, %v418, 0
      %v452 = vsel %vm429, %v419, 0
      %454 = vmatprep.subr.mxu0 0.0
      %455 = vmatpush1.msra.mxu0 0.0
      %456 = vmatprep.subr.mxu0 0.0
      %457 = vmatpush1.msra.mxu0 0.0
      %458 = vmatprep.subr.mxu0 0.0
      %459 = vmatpush1.msra.mxu0 0.0
      %460 = vmatprep.subr.mxu0 0.0
      %461 = vmatpush1.msra.mxu0 0.0
      %462 = vmatprep.subr.mxu0 0.0
      %463 = vmatpush1.msra.mxu0 0.0
      %464 = vmatprep.subr.mxu0 0.0
      %465 = vmatpush1.msra.mxu0 0.0
      %466 = vmatprep.subr.mxu0 0.0
      %467 = vmatpush1.msra.mxu0 0.0
      %468 = vmatprep.subr.mxu0 0.0
      %469 = vmatpush1.msra.mxu0 0.0
      %470 = vmatprep.subr.mxu0 0.0
      %471 = vmatpush1.msra.mxu0 0.0
      %472 = vmatprep.subr.mxu0 0.0
      %473 = vmatpush1.msra.mxu0 0.0
      %474 = vmatprep.subr.mxu0 0.0
      %475 = vmatpush1.msra.mxu0 0.0
      %476 = vmatprep.subr.mxu0 0.0
      %477 = vmatpush1.msra.mxu0 0.0
      %478 = vmatprep.subr.mxu0 0.0
      %479 = vmatpush1.msra.mxu0 0.0
      %480 = vmatprep.subr.mxu0 0.0
      %481 = vmatpush1.msra.mxu0 0.0
      %482 = vmatprep.subr.mxu0 0.0
      %483 = vmatpush1.msra.mxu0 %v421
      %484 = vmatprep.subr.mxu0 0.0
      %485 = vmatpush1.msra.mxu0 %v420
      %486 = vmatprep.subr.mxu0 0.0
      %487 = vmatpush2.msra.mxu0 0.0
      %488 = vmatprep.subr.mxu0 0.0
      %489 = vmatpush2.msra.mxu0 0.0
      %490 = vmatprep.subr.mxu0 0.0
      %491 = vmatpush2.msra.mxu0 0.0
      %492 = vmatprep.subr.mxu0 0.0
      %493 = vmatpush2.msra.mxu0 0.0
      %494 = vmatprep.subr.mxu0 0.0
      %495 = vmatpush2.msra.mxu0 0.0
      %496 = vmatprep.subr.mxu0 0.0
      %497 = vmatpush2.msra.mxu0 0.0
      %498 = vmatprep.subr.mxu0 0.0
      %499 = vmatpush2.msra.mxu0 0.0
      %500 = vmatprep.subr.mxu0 0.0
      %501 = vmatpush2.msra.mxu0 0.0
      %502 = vmatprep.subr.mxu0 0.0
      %503 = vmatpush2.msra.mxu0 0.0
      %504 = vmatprep.subr.mxu0 0.0
      %505 = vmatpush2.msra.mxu0 0.0
      %506 = vmatprep.subr.mxu0 0.0
      %507 = vmatpush2.msra.mxu0 0.0
      %508 = vmatprep.subr.mxu0 0.0
      %509 = vmatpush2.msra.mxu0 0.0
      %510 = vmatprep.subr.mxu0 0.0
      %511 = vmatpush2.msra.mxu0 0.0
      %512 = vmatprep.subr.mxu0 0.0
      %513 = vmatpush2.msra.mxu0 0.0
      %514 = vmatprep.subr.mxu0 0.0
      %515 = vmatpush2.msra.mxu0 0.0
      %516 = vmatprep.subr.mxu0 0.0
      %517 = vmatpush2.msra.mxu0 0.0
      %518 = vmatprep.mubr.f32.mxu0 0.0
      %519 = vmatmul.mubr.f32.gmra.mxu0 %v431
      %v520 = vpop.f32.mrf.mxu0
      %v521 = vadd.f32 %v427, %v520
      %v522 = vpop.f32.mrf.mxu0
      %523 = vmatprep.mubr.f32.mxu0 0.0
      %524 = vmatmul.mubr.f32.gmra.mxu0 %v434
      %v525 = vpop.f32.mrf.mxu0
      %v526 = vadd.f32 %v427, %v525
      %v527 = vpop.f32.mrf.mxu0
      %528 = vmatprep.mubr.f32.mxu0 0.0
      %529 = vmatmul.mubr.f32.gmra.mxu0 %v437
      %v530 = vpop.f32.mrf.mxu0
      %v531 = vadd.f32 %v427, %v530
      %v532 = vpop.f32.mrf.mxu0
      %533 = vmatprep.mubr.f32.mxu0 0.0
      %534 = vmatmul.mubr.f32.gmra.mxu0 %v440
      %v535 = vpop.f32.mrf.mxu0
      %v536 = vadd.f32 %v427, %v535
      %v537 = vpop.f32.mrf.mxu0
      %538 = vmatprep.mubr.f32.mxu0 0.0
      %539 = vmatmul.mubr.f32.gmra.mxu0 %v443
      %v540 = vpop.f32.mrf.mxu0
      %v541 = vadd.f32 %v427, %v540
      %v542 = vpop.f32.mrf.mxu0
      %543 = vmatprep.mubr.f32.mxu0 0.0
      %544 = vmatmul.mubr.f32.gmra.mxu0 %v446
      %v545 = vpop.f32.mrf.mxu0
      %v546 = vadd.f32 %v427, %v545
      %v547 = vpop.f32.mrf.mxu0
      %548 = vmatprep.mubr.f32.mxu0 0.0
      %549 = vmatmul.mubr.f32.gmra.mxu0 %v449
      %v550 = vpop.f32.mrf.mxu0
      %v551 = vadd.f32 %v427, %v550
      %v552 = vpop.f32.mrf.mxu0
      %553 = vmatprep.mubr.f32.mxu0 0.0
      %554 = vmatmul.mubr.f32.gmra.mxu0 %v452
      %v555 = vpop.f32.mrf.mxu0
      %v556 = vadd.f32 %v427, %v555
      %v557 = vpop.f32.mrf.mxu0
      %558 = vdwg.mxu0
      %v559 = vld [vmem:[%s360] sm:$0x1]
      %v561 = vlaneseq
      %v562 = vshrl.u32 %v561, 7
      %v563 = vsub.s32 0, %v562
      %v564 = vrot.slane %v559, %v563
      %v566 = vmul.f32 %v521, %v564
      %v567 = vmul.f32 %v526, %v564
      %v568 = vmul.f32 %v531, %v564
      %v569 = vmul.f32 %v536, %v564
      %v570 = vmul.f32 %v541, %v564
      %v571 = vmul.f32 %v546, %v564
      %v572 = vmul.f32 %v551, %v564
      %v573 = vmul.f32 %v556, %v564
      %v574 = vld [vmem:[%s363] sm:$0x1]
      %v576 = vlaneseq
      %v577 = vshrl.u32 %v576, 7
      %v578 = vsub.s32 0, %v577
      %v579 = vrot.slane %v574, %v578
      %v581 = vadd.f32 %v566, %v579
      %v582 = vadd.f32 %v567, %v579
      %v583 = vadd.f32 %v568, %v579
      %v584 = vadd.f32 %v569, %v579
      %v585 = vadd.f32 %v570, %v579
      %v586 = vadd.f32 %v571, %v579
      %v587 = vadd.f32 %v572, %v579
      %v588 = vadd.f32 %v573, %v579
      %v589 = vmax.f32 %v581, 0.0
      %v590 = vmax.f32 %v582, 0.0
      %v591 = vmax.f32 %v583, 0.0
      %v592 = vmax.f32 %v584, 0.0
      %v593 = vmax.f32 %v585, 0.0
      %v594 = vmax.f32 %v586, 0.0
      %v595 = vmax.f32 %v587, 0.0
      %v596 = vmax.f32 %v588, 0.0
      %vm597 = vcmask 31744
      %598 = vst.msk [vmem:[%s372] sm:$0xff] %vm597, %v589
      %599 = vst.msk [vmem:[%s372 + $0x8] sm:$0xff] %vm597, %v590
      %600 = vst.msk [vmem:[%s372 + $0x10] sm:$0xff] %vm597, %v591
      %601 = vst.msk [vmem:[%s372 + $0x18] sm:$0xff] %vm597, %v592
      %602 = vst.msk [vmem:[%s372 + $0x20] sm:$0xff] %vm597, %v593
      %603 = vst.msk [vmem:[%s372 + $0x28] sm:$0xff] %vm597, %v594
      %604 = vst.msk [vmem:[%s372 + $0x30] sm:$0xff] %vm597, %v595
      %605 = vst.msk [vmem:[%s372 + $0x38] sm:$0xff] %vm597, %v596
      %s606 = smul.u32 8, %s23
      %p607 = scmp.lt.s32.totalorder %s22, 1
      %s608 = scalar_select %p607, %s22, 1
      %p609 = scmp.lt.s32.totalorder %s606, 7
      %s610 = scalar_select %p609, %s606, 7
      %s611 = smul.addr %s608, 8
      %s612 = sadd.s32 %s610, %s611
      %s613 = smul.addr %s612, 8
      %s614 = scalar_lea.vmem %s7, %s613
      // Predicated region
      $region49: #{tpu_custom_call.1} parent=47 // pred_check
        %p615 = pneg %p224
      $region50: #{tpu_custom_call.1} parent=47 // pred_check_branch
        %617 = sbr.rel (%p615) target = $region52
      $region51: #{tpu_custom_call.1} parent=47 // pred_region
        %s618 = smul.u32 8, %s23
      $region52: #{tpu_custom_call.1} parent=47 // pred_fallthru
        _
    $region48: #{tpu_custom_call.1} parent=5 // pred_fallthru
      _
    %p619 = scmp.le.s32.totalorder 2, %s13
    // Predicated region
    $region53: #{tpu_custom_call.1} parent=5 // pred_check
      %p620 = pneg %p619
    $region54: #{tpu_custom_call.1} parent=5 // pred_check_branch
      %622 = sbr.rel (%p620) target = $region56
    $region55: #{tpu_custom_call.1} parent=5 // pred_region
      %s623 = ssub.s32 %s13, 2
      // Predicated region
      $region57: #{tpu_custom_call.1} parent=55 // pred_check
        %p624 = pneg %p230
      $region58: #{tpu_custom_call.1} parent=55 // pred_check_branch
        %626 = sbr.rel (%p624) target = $region60
      $region59: #{tpu_custom_call.1} parent=55 // pred_region
        %s627 = smul.u32 8, %s25
        %p628 = scmp.lt.s32.totalorder %s24, 1
        %s629 = scalar_select %p628, %s24, 1
        %p630 = scmp.lt.s32.totalorder %s627, 7
        %s631 = scalar_select %p630, %s627, 7
        %s632 = smul.addr %s629, 8
        %s633 = sadd.s32 %s631, %s632
        %s634 = smul.addr %s633, 8
        %s635 = scalar_lea.vmem %s7, %s634
      $region60: #{tpu_custom_call.1} parent=55 // pred_fallthru
        _
    $region56: #{tpu_custom_call.1} parent=5 // pred_fallthru
      _
  $region6: #{tpu_custom_call.1} parent=0 // loop_footer
    %s17 = sadd.s32 1, %s13
  $region7: #{tpu_custom_call.1} parent=0 // loop_footer_branch
    %12 = sbr.rel target = $region3
  $region8: #{tpu_custom_call.1} parent=0 // loop_exit
    _

</llo_original>
